<compile_context>
chip_gen: v5e
topology: v5e:2x2
jax: 0.10.0
libtpu: 0.0.40
codegen_flags: <defaults>
</compile_context>

<pallas_src>
import functools

import jax
import jax.numpy as jnp
from jax.experimental import pallas as pl
from jax.experimental.pallas import tpu as pltpu


def _channel_attention_kernel(x_ref, w1t_ref, w2t_ref, o_ref,
                              sum_acc, max_acc, *, hw_total, thw):
    # x_ref  : (TN, C, THW) input tile, native dtype
    # w1t_ref: (C, Hpad)  = conv1 weight (hidden, C, 1, 1) transposed, hidden padded
    # w2t_ref: (Hpad, C)  = conv2 weight (C, hidden, 1, 1) transposed, hidden padded
    # o_ref  : (TN, C)    attention weights (written on the last spatial tile only)
    # sum_acc/max_acc : (TN, C) f32 running pooling accumulators (VMEM scratch)
    s = pl.program_id(1)

    @pl.when(s == 0)
    def _init():
        sum_acc[...] = jnp.zeros_like(sum_acc)
        max_acc[...] = jnp.full_like(max_acc, -jnp.inf)

    x = x_ref[...].astype(jnp.float32)                     # (TN, C, THW)

    if hw_total % thw != 0:
        # Mask the padded spatial tail of the last tile: zeros for the sum,
        # -inf for the max, so neither corrupts the pooled statistics.
        pos = jax.lax.broadcasted_iota(jnp.int32, x.shape, 2) + s * thw
        valid = pos < hw_total
        x_sum = jnp.where(valid, x, 0.0)
        x_max = jnp.where(valid, x, -jnp.inf)
    else:
        x_sum = x
        x_max = x

    sum_acc[...] += jnp.sum(x_sum, axis=-1)                            # (TN, C)
    max_acc[...] = jnp.maximum(max_acc[...], jnp.max(x_max, axis=-1))  # (TN, C)

    @pl.when(s == pl.num_programs(1) - 1)
    def _finalize():
        avg_pool = sum_acc[...] * (1.0 / hw_total)         # true H*W denominator
        max_pool = max_acc[...]
        tn = avg_pool.shape[0]
        pooled = jnp.concatenate([avg_pool, max_pool], axis=0)   # (2*TN, C)
        h = jnp.dot(pooled, w1t_ref[...],
                    preferred_element_type=jnp.float32)          # (2*TN, Hpad)
        h = jnp.maximum(h, 0.0)                                  # ReLU
        y = jnp.dot(h, w2t_ref[...],
                    preferred_element_type=jnp.float32)          # (2*TN, C)
        out = y[:tn] + y[tn:]                                    # avg_out + max_out
        o_ref[...] = jax.nn.sigmoid(out).astype(o_ref.dtype)


def channel_attention(x_nchw, w1, w2, *, tn=8, thw=None, thw_budget_bytes=6 << 20):
    """x_nchw: (N, C, H, W) any float dtype; w1: (hidden, C); w2: (C, hidden).
    Returns (N, C, 1, 1) sigmoid channel-attention weights (same dtype as x)."""
    N, C, H, W = x_nchw.shape
    HW = H * W
    hidden = w1.shape[0]
    dtype = x_nchw.dtype
    itemsize = jnp.dtype(dtype).itemsize

    # Stream x in its native dtype; only the tiny pooled tensors / MLP are f32.
    x3 = x_nchw.reshape(N, C, HW)

    # Pad the bottleneck dim up to a sublane multiple (8). Zero rows/cols are
    # mathematically inert through ReLU and the second matmul.
    hpad = max(8, ((hidden + 7) // 8) * 8)
    w1t = jnp.zeros((C, hpad), jnp.float32).at[:, :hidden].set(
        jnp.transpose(w1).astype(jnp.float32))
    w2t = jnp.zeros((hpad, C), jnp.float32).at[:hidden, :].set(
        jnp.transpose(w2).astype(jnp.float32))

    TN = min(N, tn)

    # Spatial tile: multiple of 128 (or the full extent), sized so that a
    # double-buffered input tile stays under ~thw_budget_bytes*2 (< 16 MiB
    # scoped default on v5e; comfortably inside v6e/v7x budgets too).
    if thw is not None:
        THW = min(thw, HW)
    elif HW <= 512:
        THW = HW
    else:
        max_thw = max(128, thw_budget_bytes // (2 * TN * C * itemsize))
        THW = min(HW, (max_thw // 128) * 128)

    grid = (pl.cdiv(N, TN), pl.cdiv(HW, THW))

    kernel = functools.partial(_channel_attention_kernel, hw_total=HW, thw=THW)

    cost = pl.CostEstimate(
        flops=int(2 * N * C * HW + 2 * 2 * (2 * N) * C * hpad),
        transcendentals=int(N * C),
        bytes_accessed=int(N * C * HW * itemsize + 2 * C * hpad * 4 + N * C * itemsize),
    )

    out = pl.pallas_call(
        kernel,
        out_shape=jax.ShapeDtypeStruct((N, C), dtype),
        grid_spec=pltpu.PrefetchScalarGridSpec(
            num_scalar_prefetch=0,
            grid=grid,
            in_specs=[
                pl.BlockSpec((TN, C, THW), lambda n, s: (n, 0, s)),
                pl.BlockSpec((C, hpad), lambda n, s: (0, 0)),   # resident weights
                pl.BlockSpec((hpad, C), lambda n, s: (0, 0)),   # resident weights
            ],
            out_specs=pl.BlockSpec((TN, C), lambda n, s: (n, 0)),
            scratch_shapes=[
                pltpu.VMEM((TN, C), jnp.float32),   # running sum
                pltpu.VMEM((TN, C), jnp.float32),   # running max
            ],
        ),
        compiler_params=pltpu.CompilerParams(
            dimension_semantics=("parallel", "arbitrary"),
        ),
        cost_estimate=cost,
    )(x3, w1t, w2t)
    return out.reshape(N, C, 1, 1)


def channel_attention_ref(x_nchw, w1, w2):
    """Pure-JAX reference mirroring the PyTorch forward."""
    N, C, H, W = x_nchw.shape
    avg_p = jnp.mean(x_nchw.astype(jnp.float32), axis=(2, 3))  # (N, C)
    max_p = jnp.max(x_nchw.astype(jnp.float32), axis=(2, 3))   # (N, C)

    def fc(p):
        h = jnp.maximum(p @ w1.T.astype(jnp.float32), 0.0)
        return h @ w2.T.astype(jnp.float32)

    out = jax.nn.sigmoid(fc(avg_p) + fc(max_p)).astype(x_nchw.dtype)
    return out.reshape(N, C, 1, 1)


if __name__ == "__main__":
    # Module hard-codes `in_planes // 16` for the bottleneck, so use C >= 16.
    N, C, H, W = 2, 32, 12, 12       # HW = 144: exercises 2 spatial tiles + masked tail
    hidden = C // 16                 # = 2

    key = jax.random.PRNGKey(0)
    kx, k1, k2 = jax.random.split(key, 3)

    x = jax.random.normal(kx, (N, C, H, W), dtype=jnp.float32)
    # Bias-free 1x1 conv weights (Conv2d shapes (hidden, C, 1, 1) / (C, hidden, 1, 1), squeezed).
    w1 = jax.random.normal(k1, (hidden, C), dtype=jnp.float32) * (1.0 / jnp.sqrt(C))
    w2 = jax.random.normal(k2, (C, hidden), dtype=jnp.float32) * (1.0 / jnp.sqrt(hidden))

    # thw=128 forces grid=(1, 2) with a masked remainder tile at this small shape.
    out = channel_attention(x, w1, w2, thw=128)
    out = jax.block_until_ready(out)

    ref = channel_attention_ref(x, w1, w2)
    assert out.shape == (N, C, 1, 1)
    assert jnp.allclose(out, ref, atol=1e-5, rtol=1e-5), "mismatch vs reference"

    print("KERNEL_OK")
</pallas_src>

<mosaic_0001>
module attributes {stable_mosaic.version = 11 : i64} {
  func.func @_channel_attention_kernel(%arg0: i32, %arg1: i32, %arg2: memref<2x32x128xf32, #tpu.memory_space<vmem>>, %arg3: memref<32x8xf32, #tpu.memory_space<vmem>>, %arg4: memref<8x32xf32, #tpu.memory_space<vmem>>, %arg5: memref<2x32xf32, #tpu.memory_space<vmem>>, %arg6: memref<2x32xf32, #tpu.memory_space<vmem>>, %arg7: memref<2x32xf32, #tpu.memory_space<vmem>>) attributes {dimension_semantics = [#tpu.dimension_semantics<parallel>, #tpu.dimension_semantics<arbitrary>], iteration_bounds = array<i64: 1, 2>, scalar_prefetch = 0 : i64, scratch_operands = 2 : i64, tpu.core_type = #tpu.core_type<tc>, window_params = [{transform_indices = @transform_0, window_bounds = array<i64: 2, 32, 128>}, {pipeline_mode = #tpu.pipeline_mode<synchronous>, transform_indices = @transform_1, window_bounds = array<i64: 32, 8>}, {pipeline_mode = #tpu.pipeline_mode<synchronous>, transform_indices = @transform_2, window_bounds = array<i64: 8, 32>}, {transform_indices = @transform_3, window_bounds = array<i64: 2, 32>}]} {
    %c0_i32 = arith.constant 0 : i32
    %0 = arith.cmpi eq, %arg1, %c0_i32 : i32
    %1 = arith.extui %0 : i1 to i32
    %c0_i32_0 = arith.constant 0 : i32
    %2 = arith.cmpi ne, %1, %c0_i32_0 : i32
    scf.if %2 {
      %cst_15 = arith.constant 0.000000e+00 : f32
      %25 = vector.broadcast %cst_15 : f32 to vector<2x32xf32>
      %c0_16 = arith.constant 0 : index
      %c0_17 = arith.constant 0 : index
      %26 = vector.load %arg6[%c0_16, %c0_17] : memref<2x32xf32, #tpu.memory_space<vmem>>, vector<2x32xf32>
      tpu.vector_store %arg6[%c0_16, %c0_17], %25 {strides = array<i32>} : memref<2x32xf32, #tpu.memory_space<vmem>>, vector<2x32xf32>,
      %cst_18 = arith.constant 0xFF800000 : f32
      %27 = vector.broadcast %cst_18 : f32 to vector<2x32xf32>
      %c0_19 = arith.constant 0 : index
      %c0_20 = arith.constant 0 : index
      %28 = vector.load %arg7[%c0_19, %c0_20] : memref<2x32xf32, #tpu.memory_space<vmem>>, vector<2x32xf32>
      tpu.vector_store %arg7[%c0_19, %c0_20], %27 {strides = array<i32>} : memref<2x32xf32, #tpu.memory_space<vmem>>, vector<2x32xf32>,
    } else {
    }
    %c0 = arith.constant 0 : index
    %c0_1 = arith.constant 0 : index
    %c0_2 = arith.constant 0 : index
    %3 = vector.load %arg2[%c0, %c0_1, %c0_2] : memref<2x32x128xf32, #tpu.memory_space<vmem>>, vector<2x32x128xf32>
    %4 = tpu.iota {dimensions = array<i32: 2>} : vector<2x32x128xi32>
    %c128_i32 = arith.constant 128 : i32
    %5 = arith.muli %arg1, %c128_i32 : i32
    %6 = vector.broadcast %5 : i32 to vector<2x32x128xi32>
    %7 = arith.addi %4, %6 : vector<2x32x128xi32>
    %c144_i32 = arith.constant 144 : i32
    %8 = vector.broadcast %c144_i32 : i32 to vector<2x32x128xi32>
    %9 = arith.cmpi slt, %7, %8 : vector<2x32x128xi32>
    %cst = arith.constant 0.000000e+00 : f32
    %10 = vector.broadcast %cst : f32 to vector<2x32x128xf32>
    %11 = arith.select %9, %3, %10 : vector<2x32x128xi1>, vector<2x32x128xf32>
    %cst_3 = arith.constant 0xFF800000 : f32
    %12 = vector.broadcast %cst_3 : f32 to vector<2x32x128xf32>
    %13 = arith.select %9, %3, %12 : vector<2x32x128xi1>, vector<2x32x128xf32>
    %c0_4 = arith.constant 0 : index
    %c0_5 = arith.constant 0 : index
    %14 = vector.load %arg6[%c0_4, %c0_5] : memref<2x32xf32, #tpu.memory_space<vmem>>, vector<2x32xf32>
    %cst_6 = arith.constant dense<0.000000e+00> : vector<2x32xf32>
    %15 = vector.multi_reduction <add>, %11, %cst_6 [2] : vector<2x32x128xf32> to vector<2x32xf32>
    %16 = arith.addf %14, %15 : vector<2x32xf32>
    %c0_7 = arith.constant 0 : index
    %c0_8 = arith.constant 0 : index
    %17 = vector.load %arg6[%c0_7, %c0_8] : memref<2x32xf32, #tpu.memory_space<vmem>>, vector<2x32xf32>
    tpu.vector_store %arg6[%c0_7, %c0_8], %16 {strides = array<i32>} : memref<2x32xf32, #tpu.memory_space<vmem>>, vector<2x32xf32>,
    %c0_9 = arith.constant 0 : index
    %c0_10 = arith.constant 0 : index
    %18 = vector.load %arg7[%c0_9, %c0_10] : memref<2x32xf32, #tpu.memory_space<vmem>>, vector<2x32xf32>
    %cst_11 = arith.constant dense<0xFF800000> : vector<2x32xf32>
    %19 = vector.multi_reduction <maximumf>, %13, %cst_11 [2] : vector<2x32x128xf32> to vector<2x32xf32>
    %20 = arith.maximumf %18, %19 : vector<2x32xf32>
    %c0_12 = arith.constant 0 : index
    %c0_13 = arith.constant 0 : index
    %21 = vector.load %arg7[%c0_12, %c0_13] : memref<2x32xf32, #tpu.memory_space<vmem>>, vector<2x32xf32>
    tpu.vector_store %arg7[%c0_12, %c0_13], %20 {strides = array<i32>} : memref<2x32xf32, #tpu.memory_space<vmem>>, vector<2x32xf32>,
    %c1_i32 = arith.constant 1 : i32
    %22 = arith.cmpi eq, %arg1, %c1_i32 : i32
    %23 = arith.extui %22 : i1 to i32
    %c0_i32_14 = arith.constant 0 : i32
    %24 = arith.cmpi ne, %23, %c0_i32_14 : i32
    scf.if %24 {
      %c0_15 = arith.constant 0 : index
      %c0_16 = arith.constant 0 : index
      %25 = vector.load %arg6[%c0_15, %c0_16] : memref<2x32xf32, #tpu.memory_space<vmem>>, vector<2x32xf32>
      %cst_17 = arith.constant 0.0069444445 : f32
      %26 = vector.broadcast %cst_17 : f32 to vector<2x32xf32>
      %27 = arith.mulf %25, %26 : vector<2x32xf32>
      %c0_18 = arith.constant 0 : index
      %c0_19 = arith.constant 0 : index
      %28 = vector.load %arg7[%c0_18, %c0_19] : memref<2x32xf32, #tpu.memory_space<vmem>>, vector<2x32xf32>
      %29 = tpu.concatenate %27, %28 in 0 : vector<2x32xf32>, vector<2x32xf32> -> vector<4x32xf32>
      %c0_20 = arith.constant 0 : index
      %c0_21 = arith.constant 0 : index
      %30 = vector.load %arg3[%c0_20, %c0_21] : memref<32x8xf32, #tpu.memory_space<vmem>>, vector<32x8xf32>
      %cst_22 = arith.constant dense<0.000000e+00> : vector<4x8xf32>
      %31 = tpu.matmul %29, %30, %cst_22 {dimension_numbers = #tpu.dot_dimension_numbers<[1], [0], [0], [1], [0, 0, 1, 1], [], []>} : vector<4x32xf32>, vector<32x8xf32>, vector<4x8xf32> -> vector<4x8xf32>
      %cst_23 = arith.constant 0.000000e+00 : f32
      %32 = vector.broadcast %cst_23 : f32 to vector<4x8xf32>
      %33 = arith.maximumf %31, %32 : vector<4x8xf32>
      %c0_24 = arith.constant 0 : index
      %c0_25 = arith.constant 0 : index
      %34 = vector.load %arg4[%c0_24, %c0_25] : memref<8x32xf32, #tpu.memory_space<vmem>>, vector<8x32xf32>
      %cst_26 = arith.constant dense<0.000000e+00> : vector<4x32xf32>
      %35 = tpu.matmul %33, %34, %cst_26 {dimension_numbers = #tpu.dot_dimension_numbers<[1], [0], [0], [1], [0, 0, 1, 1], [], []>} : vector<4x8xf32>, vector<8x32xf32>, vector<4x32xf32> -> vector<4x32xf32>
      %36 = vector.extract_strided_slice %35 {offsets = [0, 0], sizes = [2, 32], strides = [1, 1]} : vector<4x32xf32> to vector<2x32xf32>
      %37 = vector.extract_strided_slice %35 {offsets = [2, 0], sizes = [2, 32], strides = [1, 1]} : vector<4x32xf32> to vector<2x32xf32>
      %38 = arith.addf %36, %37 : vector<2x32xf32>
      %39 = arith.negf %38 : vector<2x32xf32>
      %40 = math.exp %39 : vector<2x32xf32>
      %cst_27 = arith.constant 1.000000e+00 : f32
      %41 = vector.broadcast %cst_27 : f32 to vector<2x32xf32>
      %42 = arith.addf %41, %40 : vector<2x32xf32>
      %43 = arith.divf %41, %42 : vector<2x32xf32>
      %c0_28 = arith.constant 0 : index
      %c0_29 = arith.constant 0 : index
      %44 = vector.load %arg5[%c0_28, %c0_29] : memref<2x32xf32, #tpu.memory_space<vmem>>, vector<2x32xf32>
      tpu.vector_store %arg5[%c0_28, %c0_29], %43 {strides = array<i32>} : memref<2x32xf32, #tpu.memory_space<vmem>>, vector<2x32xf32>,
    } else {
    }
    return
  }
  func.func @transform_0(%arg0: i32, %arg1: i32) -> (i32, i32, i32) {
    %c0_i32 = arith.constant 0 : i32
    %c0_i32_0 = arith.constant 0 : i32
    return %arg0, %c0_i32, %arg1 : i32, i32, i32
  }
  func.func @transform_1(%arg0: i32, %arg1: i32) -> (i32, i32) {
    %c0_i32 = arith.constant 0 : i32
    %c0_i32_0 = arith.constant 0 : i32
    %c0_i32_1 = arith.constant 0 : i32
    return %c0_i32, %c0_i32_0 : i32, i32
  }
  func.func @transform_2(%arg0: i32, %arg1: i32) -> (i32, i32) {
    %c0_i32 = arith.constant 0 : i32
    %c0_i32_0 = arith.constant 0 : i32
    %c0_i32_1 = arith.constant 0 : i32
    return %c0_i32, %c0_i32_0 : i32, i32
  }
  func.func @transform_3(%arg0: i32, %arg1: i32) -> (i32, i32) {
    %c0_i32 = arith.constant 0 : i32
    %c0_i32_0 = arith.constant 0 : i32
    return %arg0, %c0_i32 : i32, i32
  }
}

</mosaic_0001>

<llo_original>
// kernel: tpu_custom_call.1
$region0: #{tpu_custom_call.1}
  #allocation0 [shape = 'u32[]', space=smem, size = 0x4, offset = 0x4, fixed_abs, tag = 'smem constant byte address 0x4 - core index']
  #allocation1 [shape = 'u32[72,128]{1,0:T(1,128)}', space=vmem, size = 0x9000, scoped, tag = 'internal scratch']
  #allocation2 [shape = 'f32[2,32]{1,0:T(2,128)}', space=vmem, size = 0x400, scoped, tag = 'scratch operand']
  #allocation3 [shape = 'f32[2,32]{1,0:T(2,128)}', space=vmem, size = 0x400, scoped, tag = 'scratch operand']
  %s0 = inlined_call_operand.hbm [shape: f32[2,32,144], index: 0, kind: input, shape index: {}]
  %s1 = inlined_call_operand.vmem [shape: f32[32,8], index: 1, kind: input, shape index: {}]
  %s2 = inlined_call_operand.vmem [shape: f32[8,32], index: 2, kind: input, shape index: {}]
  %s3 = inlined_call_operand.hbm [shape: f32[2,32], index: 3, kind: output, shape index: {}]
  %s4 = sld [smem:[#allocation0]]
  $region57: #{tpu_custom_call.1} parent=0
    _
  %s6 = ssub.s32 1, %s4
  %s7 = scalar_select 0, %s6, %s4
  $region1: #{tpu_custom_call.1} parent=0
    #allocation4 [shape = 'u8[65536]{0}', space=vmem, size = 0x10000, scoped, tag = 'input window, operand 0']
    #allocation5 [shape = 's32[2]{0}', space=sflag, size = 0x8, scoped, tag = 'scoped memory for tpu_custom_call.1']
    #allocation6 [shape = 's32[2]{0}', space=sflag, size = 0x8, scoped, tag = 'scoped memory for tpu_custom_call.1']
    #allocation7 [shape = 'u8[1024]{0}', space=vmem, size = 0x400, scoped, tag = 'output window, operand 0, single buffered']
    %8 = vsyncpa [#allocation5], 0
    %s9 = scalar_lea.sflag [#allocation5], 1
    %10 = vsyncpa %s9, 0
    %11 = vsyncpa [#allocation6], 0
    loop: start=0, step=1, limit=4
    $region2: #{tpu_custom_call.1} parent=1 // loop_pre_header
      _
    $region3: #{tpu_custom_call.1} parent=1 // loop_header
      %s13 = sphi 0, %s17
      %p14 = scmp.ge.s32.totalorder %s13, 4
      %s20 = sphi 0, %s32
      %s21 = sphi 0, %s28
      %s22 = sphi 0, %s20
      %s23 = sphi 0, %s21
      %s24 = sphi 0, %s22
      %s25 = sphi 0, %s23
      %s37 = sphi 0, %s39
      %s40 = sphi 0, %s37
      %s41 = sphi 0, %s40
      %s57 = sphi 0, %s41
      %s61 = sphi 0, %s61
      %s63 = sphi 0, %s61
      %s64 = sphi 0, %s63
      %s78 = sphi 0, %s64
      %s82 = sphi 0, %s82
      %s84 = sphi 0, %s82
      %s85 = sphi 0, %s84
      %s99 = sphi 0, %s85
      %s105 = sphi 0, %s107
      %s108 = sphi 0, %s105
      %s109 = sphi 0, %s108
      %s125 = sphi 0, %s109
    $region4: #{tpu_custom_call.1} parent=1 // loop_header_branch
      %16 = sbr.rel (%p14) target = $region8
    $region5: #{tpu_custom_call.1} parent=1 // loop_body
      %s18 = ssub.s32 %s13, 1
      %s19 = ssub.s32 %s13, 2
      %s26 = sadd.s32 1, %s21
      %p27 = scmp.ge.s32.totalorder %s26, 2
      %s28 = scalar_select %p27, 0, %s26
      %s29 = sadd.s32 1, %s20
      %s30 = scalar_select %p27, %s29, %s20
      %p31 = scmp.ge.s32.totalorder %s30, 1
      %s32 = scalar_select %p31, 0, %s30
      %s33 = ssub.s32 %s20, %s32
      %s34 = ssub.s32 %s21, %s28
      %s35 = sor.u32 %s33, %s34
      %p36 = scmp.eq.s32.totalorder %s35, 0
      %s38 = sadd.s32 %s37, 1
      %s39 = scalar_select %p36, %s37, %s38
      %p42 = pneg %p36
      %p43 = scmp.eq.s32.totalorder %s13, 1
      %p44 = por %p42, %p43
      %p45 = scmp.ne.s32.totalorder %s37, %s40
      %p46 = scmp.eq.s32.totalorder %s13, 0
      %p47 = por %p45, %p46
      %p48 = scmp.ne.s32.totalorder %s37, %s40
      %p49 = scmp.eq.s32.totalorder %s18, 1
      %p50 = por %p48, %p49
      %p51 = scmp.ne.s32.totalorder %s40, %s41
      %p52 = scmp.eq.s32.totalorder %s18, 0
      %p53 = por %p51, %p52
      %p54 = scmp.ne.s32.totalorder %s40, %s41
      %p55 = scmp.eq.s32.totalorder %s19, 1
      %p56 = por %p54, %p55
      %p58 = scmp.ne.s32.totalorder %s41, %s57
      %p59 = scmp.eq.s32.totalorder %s19, 0
      %p60 = por %p58, %p59
      %s62 = sadd.s32 %s61, 1
      %p65 = scmp.eq.s32.totalorder %s13, 1
      %p66 = scmp.ne.s32.totalorder %s61, %s63
      %p67 = scmp.eq.s32.totalorder %s13, 0
      %p68 = por %p66, %p67
      %p69 = scmp.ne.s32.totalorder %s61, %s63
      %p70 = scmp.eq.s32.totalorder %s18, 1
      %p71 = por %p69, %p70
      %p72 = scmp.ne.s32.totalorder %s63, %s64
      %p73 = scmp.eq.s32.totalorder %s18, 0
      %p74 = por %p72, %p73
      %p75 = scmp.ne.s32.totalorder %s63, %s64
      %p76 = scmp.eq.s32.totalorder %s19, 1
      %p77 = por %p75, %p76
      %p79 = scmp.ne.s32.totalorder %s64, %s78
      %p80 = scmp.eq.s32.totalorder %s19, 0
      %p81 = por %p79, %p80
      %s83 = sadd.s32 %s82, 1
      %p86 = scmp.eq.s32.totalorder %s13, 1
      %p87 = scmp.ne.s32.totalorder %s82, %s84
      %p88 = scmp.eq.s32.totalorder %s13, 0
      %p89 = por %p87, %p88
      %p90 = scmp.ne.s32.totalorder %s82, %s84
      %p91 = scmp.eq.s32.totalorder %s18, 1
      %p92 = por %p90, %p91
      %p93 = scmp.ne.s32.totalorder %s84, %s85
      %p94 = scmp.eq.s32.totalorder %s18, 0
      %p95 = por %p93, %p94
      %p96 = scmp.ne.s32.totalorder %s84, %s85
      %p97 = scmp.eq.s32.totalorder %s19, 1
      %p98 = por %p96, %p97
      %p100 = scmp.ne.s32.totalorder %s85, %s99
      %p101 = scmp.eq.s32.totalorder %s19, 0
      %p102 = por %p100, %p101
      %s103 = ssub.s32 %s20, %s32
      %p104 = scmp.eq.s32.totalorder %s103, 0
      %s106 = sadd.s32 %s105, 1
      %s107 = scalar_select %p104, %s105, %s106
      %p110 = pneg %p104
      %p111 = scmp.eq.s32.totalorder %s13, 1
      %p112 = por %p110, %p111
      %p113 = scmp.ne.s32.totalorder %s105, %s108
      %p114 = scmp.eq.s32.totalorder %s13, 0
      %p115 = por %p113, %p114
      %p116 = scmp.ne.s32.totalorder %s105, %s108
      %p117 = scmp.eq.s32.totalorder %s18, 1
      %p118 = por %p116, %p117
      %p119 = scmp.ne.s32.totalorder %s108, %s109
      %p120 = scmp.eq.s32.totalorder %s18, 0
      %p121 = por %p119, %p120
      %p122 = scmp.ne.s32.totalorder %s108, %s109
      %p123 = scmp.eq.s32.totalorder %s19, 1
      %p124 = por %p122, %p123
      %p126 = scmp.ne.s32.totalorder %s109, %s125
      %p127 = scmp.eq.s32.totalorder %s19, 0
      %p128 = por %p126, %p127
      %p129 = scmp.le.s32.totalorder 1, %s13
      %p130 = scmp.lt.s32.totalorder %s13, 3
      %p131 = pnand %p129, %p130
      %p132 = pneg %p131
      // Predicated region
      $region9: #{tpu_custom_call.1} parent=5 // pred_check
        _
      $region10: #{tpu_custom_call.1} parent=5 // pred_check_branch
        %134 = sbr.rel (%p131) target = $region12
      $region11: #{tpu_custom_call.1} parent=5 // pred_region
        %s135 = ssub.s32 %s13, 1
        // Predicated region
        $region13: #{tpu_custom_call.1} parent=11 // pred_check
          %p136 = pneg %p74
        $region14: #{tpu_custom_call.1} parent=11 // pred_check_branch
          %138 = sbr.rel (%p136) target = $region16
        $region15: #{tpu_custom_call.1} parent=11 // pred_region
          _
        $region16: #{tpu_custom_call.1} parent=11 // pred_fallthru
          _
        // Predicated region
        $region17: #{tpu_custom_call.1} parent=11 // pred_check
          %p139 = pneg %p95
        $region18: #{tpu_custom_call.1} parent=11 // pred_check_branch
          %141 = sbr.rel (%p139) target = $region20
        $region19: #{tpu_custom_call.1} parent=11 // pred_region
          _
        $region20: #{tpu_custom_call.1} parent=11 // pred_fallthru
          _
      $region12: #{tpu_custom_call.1} parent=5 // pred_fallthru
        _
      %p142 = scmp.lt.s32.totalorder %s13, 2
      // Predicated region
      $region21: #{tpu_custom_call.1} parent=5 // pred_check
        %p143 = pneg %p142
      $region22: #{tpu_custom_call.1} parent=5 // pred_check_branch
        %145 = sbr.rel (%p143) target = $region24
      $region23: #{tpu_custom_call.1} parent=5 // pred_region
        // Predicated region
        $region25: #{tpu_custom_call.1} parent=23 // pred_check
          %p146 = pneg %p47
        $region26: #{tpu_custom_call.1} parent=23 // pred_check_branch
          %148 = sbr.rel (%p146) target = $region28
        $region27: #{tpu_custom_call.1} parent=23 // pred_region
          %s149 = sand.u32 %s37, 1
          %s150 = scalar_lea.sflag [#allocation5], %s149
          %s151 = sand.u32 %s37, 1
          %s152 = smul.addr %s151, 64
          %s153 = scalar_lea.vmem [#allocation4], %s152
          %s154 = smul.u32 2, %s20
          %156 = vsyncadd %s150, 0
          %s157 = smul.addr %s154, 8
          %s158 = sadd.s32 %s21, %s157
          %s159 = smul.addr %s158, 8
          %s160 = scalar_lea.hbm %s0, %s159
          %s161 = sshll.u32 %s160, 4
          %s162 = int_to_ptr.hbm [resolvable:$true] %s161
          %s163 = sshll.u32 %s153, 4
          %s164 = int_to_ptr.vmem [resolvable:$true] %s163
          %169 = dma.hbm_to_vmem [thread:$0]  %s162, 1024, %s164, %s150, 256, 128, 8
        $region28: #{tpu_custom_call.1} parent=23 // pred_fallthru
          _
      $region24: #{tpu_custom_call.1} parent=5 // pred_fallthru
        _
      %p170 = scmp.le.s32.totalorder 1, %s13
      %p171 = scmp.lt.s32.totalorder %s13, 3
      %p172 = pnand %p170, %p171
      %p173 = pneg %p172
      // Predicated region
      $region29: #{tpu_custom_call.1} parent=5 // pred_check
        _
      $region30: #{tpu_custom_call.1} parent=5 // pred_check_branch
        %175 = sbr.rel (%p172) target = $region32
      $region31: #{tpu_custom_call.1} parent=5 // pred_region
        %s176 = ssub.s32 %s13, 1
        %s177 = sand.u32 %s40, 1
        %s178 = scalar_lea.sflag [#allocation5], %s177
        %s179 = sand.u32 %s40, 1
        %s180 = smul.addr %s179, 64
        %s181 = scalar_lea.vmem [#allocation4], %s180
        // Predicated region
        $region33: #{tpu_custom_call.1} parent=31 // pred_check
          %p182 = pneg %p53
        $region34: #{tpu_custom_call.1} parent=31 // pred_check_branch
          %184 = sbr.rel (%p182) target = $region36
        $region35: #{tpu_custom_call.1} parent=31 // pred_region
          %186 = dma.done %s178, 1024
        $region36: #{tpu_custom_call.1} parent=31 // pred_fallthru
          _
        %s187 = sand.u32 %s40, 1
        %s188 = scalar_lea.sflag [#allocation5], %s187
        %s189 = sand.u32 %s40, 1
        %s190 = smul.addr %s189, 64
        %s191 = scalar_lea.vmem [#allocation4], %s190
        %p192 = pneg %p53
        %p193 = pneg %p50
        %p194 = pneg %p74
        %p195 = pneg %p71
        %p196 = pneg %p95
        %p197 = pneg %p92
        %p198 = pneg %p121
        %p199 = pneg %p118
        %s200 = smul.u32 2, %s22
        %p201 = scmp.eq.s32.totalorder %s23, 0
        // Predicated region
        $region37: #{tpu_custom_call.1} parent=31 // pred_check
          %p202 = pneg %p201
        $region38: #{tpu_custom_call.1} parent=31 // pred_check_branch
          %204 = sbr.rel (%p202) target = $region40
        $region39: #{tpu_custom_call.1} parent=31 // pred_region
          %vm205 = vcmask 254976
          %206 = vst.msk [vmem:[#allocation2] sm:$0x3] %vm205, 0.0
          %207 = vst.msk [vmem:[#allocation3] sm:$0x3] %vm205, -inf
        $region40: #{tpu_custom_call.1} parent=31 // pred_fallthru
          _
        %v208 = vld [vmem:[%s181] sm:$0xff]
        %v209 = vld [vmem:[%s181 + $0x8] sm:$0xff]
        %v210 = vld [vmem:[%s181 + $0x10] sm:$0xff]
        %v211 = vld [vmem:[%s181 + $0x18] sm:$0xff]
        %v212 = vld [vmem:[%s181 + $0x20] sm:$0xff]
        %v213 = vld [vmem:[%s181 + $0x28] sm:$0xff]
        %v214 = vld [vmem:[%s181 + $0x30] sm:$0xff]
        %v215 = vld [vmem:[%s181 + $0x38] sm:$0xff]
        %v216 = vlaneseq
        %v217 = vand.u32 %v216, 127
        %s218 = smul.u32 %s23, 128
        %v219 = vstv %s218
        %v220 = vadd.s32 %v217, %v219
        %vm221 = vcmp.lt.s32.totalorder %v220, 144
        %v222 = vsel %vm221, %v208, 0.0
        %v223 = vsel %vm221, %v209, 0.0
        %v224 = vsel %vm221, %v210, 0.0
        %v225 = vsel %vm221, %v211, 0.0
        %v226 = vsel %vm221, %v212, 0.0
        %v227 = vsel %vm221, %v213, 0.0
        %v228 = vsel %vm221, %v214, 0.0
        %v229 = vsel %vm221, %v215, 0.0
        %v230 = vsel %vm221, %v208, -inf
        %v231 = vsel %vm221, %v209, -inf
        %v232 = vsel %vm221, %v210, -inf
        %v233 = vsel %vm221, %v211, -inf
        %v234 = vsel %vm221, %v212, -inf
        %v235 = vsel %vm221, %v213, -inf
        %v236 = vsel %vm221, %v214, -inf
        %v237 = vsel %vm221, %v215, -inf
        %v238 = vld [vmem:[#allocation2] sm:$0x3]
        %239 = vadd.xlane.f32.xlu0 %v222
        %v240 = vpop.xlane.xlu0 %239
        %241 = vadd.xlane.f32.xlu0 %v223
        %v242 = vpop.xlane.xlu0 %241
        %243 = vadd.xlane.f32.xlu0 %v224
        %v244 = vpop.xlane.xlu0 %243
        %245 = vadd.xlane.f32.xlu0 %v225
        %v246 = vpop.xlane.xlu0 %245
        %247 = vadd.xlane.f32.xlu0 %v226
        %v248 = vpop.xlane.xlu0 %247
        %249 = vadd.xlane.f32.xlu0 %v227
        %v250 = vpop.xlane.xlu0 %249
        %251 = vadd.xlane.f32.xlu0 %v228
        %v252 = vpop.xlane.xlu0 %251
        %253 = vadd.xlane.f32.xlu0 %v229
        %v254 = vpop.xlane.xlu0 %253
        %v263 = vperm.slane %v240, %v217
        %v264 = vadd.s32 %v217, 4294967288
        %v265 = vperm.slane %v242, %v264
        %vm266 = vcmask 130112
        %v267 = vsel %vm266, %v265, %v263
        %v268 = vadd.s32 %v217, 4294967280
        %v269 = vperm.slane %v244, %v268
        %vm270 = vcmask 195712
        %v271 = vsel %vm270, %v269, %v267
        %v272 = vadd.s32 %v217, 4294967272
        %v273 = vperm.slane %v246, %v272
        %vm274 = vcmask 261312
        %v275 = vsel %vm274, %v273, %v271
        %v276 = vperm.slane %v248, %v217
        %v277 = vperm.slane %v250, %v264
        %v278 = vsel %vm266, %v277, %v276
        %v279 = vperm.slane %v252, %v268
        %v280 = vsel %vm270, %v279, %v278
        %v281 = vperm.slane %v254, %v272
        %v282 = vsel %vm274, %v281, %v280
        %vm283 = vcmask 1041409
        %v284 = vsel %vm283, %v282, %v275
        %v286 = vadd.f32 %v238, %v284
        %vm287 = vcmask 254976
        %288 = vst.msk [vmem:[#allocation2] sm:$0x3] %vm287, %v286
        %v289 = vld [vmem:[#allocation3] sm:$0x3]
        %290 = vmax.xlane.f32.xlu0 %v230
        %v291 = vpop.xlane.xlu0 %290
        %292 = vmax.xlane.f32.xlu0 %v231
        %v293 = vpop.xlane.xlu0 %292
        %294 = vmax.xlane.f32.xlu0 %v232
        %v295 = vpop.xlane.xlu0 %294
        %296 = vmax.xlane.f32.xlu0 %v233
        %v297 = vpop.xlane.xlu0 %296
        %298 = vmax.xlane.f32.xlu0 %v234
        %v299 = vpop.xlane.xlu0 %298
        %300 = vmax.xlane.f32.xlu0 %v235
        %v301 = vpop.xlane.xlu0 %300
        %302 = vmax.xlane.f32.xlu0 %v236
        %v303 = vpop.xlane.xlu0 %302
        %304 = vmax.xlane.f32.xlu0 %v237
        %v305 = vpop.xlane.xlu0 %304
        %v314 = vperm.slane %v291, %v217
        %v315 = vperm.slane %v293, %v264
        %v316 = vsel %vm266, %v315, %v314
        %v317 = vperm.slane %v295, %v268
        %v318 = vsel %vm270, %v317, %v316
        %v319 = vperm.slane %v297, %v272
        %v320 = vsel %vm274, %v319, %v318
        %v321 = vperm.slane %v299, %v217
        %v322 = vperm.slane %v301, %v264
        %v323 = vsel %vm266, %v322, %v321
        %v324 = vperm.slane %v303, %v268
        %v325 = vsel %vm270, %v324, %v323
        %v326 = vperm.slane %v305, %v272
        %v327 = vsel %vm274, %v326, %v325
        %v328 = vsel %vm283, %v327, %v320
        %v330 = vmax.f32 %v289, %v328
        %331 = vst.msk [vmem:[#allocation3] sm:$0x3] %vm287, %v330
        %p332 = scmp.eq.s32.totalorder %s23, 1
        // Predicated region
        $region41: #{tpu_custom_call.1} parent=31 // pred_check
          %p333 = pneg %p332
        $region42: #{tpu_custom_call.1} parent=31 // pred_check_branch
          %335 = sbr.rel (%p333) target = $region44
        $region43: #{tpu_custom_call.1} parent=31 // pred_region
          %v336 = vld [vmem:[#allocation2] sm:$0x3]
          %v337 = vmul.f32 %v336, 0.0069444445
          %v338 = vld [vmem:[#allocation3] sm:$0x3]
          %v340 = vrot.slane %v338, 6
          %vm342 = vcmask 1041408
          %v343 = vsel %vm342, %v337, %v340
          %v344 = vld [vmem:[%s1] sm:$0xff]
          %v345 = vld [vmem:[%s1 + $0x8] sm:$0xff]
          %v346 = vld [vmem:[%s1 + $0x10] sm:$0xff]
          %v347 = vld [vmem:[%s1 + $0x18] sm:$0xff]
          %vm348 = vcmask 261120
          %v350 = vsel %vm348, %v343, 0
          %352 = vmatpush.msra.mxu0 0.0
          %353 = vmatpush.msra.mxu0 0.0
          %354 = vmatpush.msra.mxu0 0.0
          %355 = vmatpush.msra.mxu0 0.0
          %356 = vmatpush.msra.mxu0 0.0
          %357 = vmatpush.msra.mxu0 0.0
          %358 = vmatpush.msra.mxu0 0.0
          %359 = vmatpush.msra.mxu0 0.0
          %360 = vmatpush.msra.mxu0 0.0
          %361 = vmatpush.msra.mxu0 0.0
          %362 = vmatpush.msra.mxu0 0.0
          %363 = vmatpush.msra.mxu0 0.0
          %364 = vmatpush.msra.mxu0 %v347
          %365 = vmatpush.msra.mxu0 %v346
          %366 = vmatpush.msra.mxu0 %v345
          %367 = vmatpush.msra.mxu0 %v344
          %368 = vmatmul.f32.gmra.mxu0 %v350
          %v369 = vpop.f32.mrf.mxu0
          %v370 = vadd.f32 0.0, %v369
          %371 = vdwg.mxu0
          %v372 = vmax.f32 %v370, 0.0
          %v373 = vld [vmem:[%s2] sm:$0xff]
          %vm374 = vcmask 64512
          %v376 = vsel %vm374, %v372, 0
          %378 = vmatpush.msra.mxu0 0.0
          %379 = vmatpush.msra.mxu0 0.0
          %380 = vmatpush.msra.mxu0 0.0
          %381 = vmatpush.msra.mxu0 0.0
          %382 = vmatpush.msra.mxu0 0.0
          %383 = vmatpush.msra.mxu0 0.0
          %384 = vmatpush.msra.mxu0 0.0
          %385 = vmatpush.msra.mxu0 0.0
          %386 = vmatpush.msra.mxu0 0.0
          %387 = vmatpush.msra.mxu0 0.0
          %388 = vmatpush.msra.mxu0 0.0
          %389 = vmatpush.msra.mxu0 0.0
          %390 = vmatpush.msra.mxu0 0.0
          %391 = vmatpush.msra.mxu0 0.0
          %392 = vmatpush.msra.mxu0 0.0
          %393 = vmatpush.msra.mxu0 %v373
          %394 = vmatmul.f32.gmra.mxu0 %v376
          %v395 = vpop.f32.mrf.mxu0
          %v396 = vadd.f32 0.0, %v395
          %397 = vdwg.mxu0
          %v399 = vrot.slane %v396, 2
          %v401 = vadd.f32 %v396, %v399
          %v402 = vxor.u32 %v401, 2147483648
          %v403 = vmul.f32 %v402, 1.442695
          %v404 = vpow.pop %v403
          %v405 = vadd.f32 %v404, 1.0
          %v406 = vrcp.pop %v405
          %v407 = vmul.f32 %v405, %v406
          %v408 = vsub.f32 1.0, %v407
          %v409 = vmul.f32 %v406, %v408
          %v410 = vadd.f32 %v406, %v409
          %vm411 = vweird.f32 %v405
          %vm412 = vweird.f32 %v406
          %vm413 = vmor %vm411, %vm412
          %v414 = vsel %vm413, %v406, %v410
          %v415 = vand.u32 2147483647, %v405
          %vm416 = vcmp.eq.f32.partialorder %v415, 8.507059e+37
          %v417 = vand.u32 %v405, 2147483648
          %v418 = vor.u32 1.1754944e-38, %v417
          %v419 = vsel %vm416, %v418, %v414
          %v420 = vmul.f32 1.0, %v419
          %421 = vst.msk [vmem:[#allocation7] sm:$0x3] %vm287, %v420
        $region44: #{tpu_custom_call.1} parent=31 // pred_fallthru
          _
        // Predicated region
        $region45: #{tpu_custom_call.1} parent=31 // pred_check
          %p422 = pneg %p118
        $region46: #{tpu_custom_call.1} parent=31 // pred_check_branch
          %424 = sbr.rel (%p422) target = $region48
        $region47: #{tpu_custom_call.1} parent=31 // pred_region
          %426 = vsyncadd [#allocation6], 0
          %s427 = smul.addr %s22, 2
          %s428 = scalar_lea.hbm %s3, %s427
          %s430 = sshll.u32 [#allocation7], 4
          %s431 = int_to_ptr.vmem [resolvable:$true] %s430
          %s432 = sshll.u32 %s428, 4
          %s433 = int_to_ptr.hbm [resolvable:$true] %s432
          %435 = dma.vmem_to_hbm [thread:$0]  %s431, 32, %s433, [#allocation6]
        $region48: #{tpu_custom_call.1} parent=31 // pred_fallthru
          _
        // Predicated region
        $region49: #{tpu_custom_call.1} parent=31 // pred_check
          %p436 = pneg %p118
        $region50: #{tpu_custom_call.1} parent=31 // pred_check_branch
          %438 = sbr.rel (%p436) target = $region52
        $region51: #{tpu_custom_call.1} parent=31 // pred_region
          %440 = dma.done [#allocation6], 32
        $region52: #{tpu_custom_call.1} parent=31 // pred_fallthru
          _
      $region32: #{tpu_custom_call.1} parent=5 // pred_fallthru
        _
      %p441 = scmp.le.s32.totalorder 2, %s13
      // Predicated region
      $region53: #{tpu_custom_call.1} parent=5 // pred_check
        %p442 = pneg %p441
      $region54: #{tpu_custom_call.1} parent=5 // pred_check_branch
        %444 = sbr.rel (%p442) target = $region56
      $region55: #{tpu_custom_call.1} parent=5 // pred_region
        %s445 = ssub.s32 %s13, 2
      $region56: #{tpu_custom_call.1} parent=5 // pred_fallthru
        _
    $region6: #{tpu_custom_call.1} parent=1 // loop_footer
      %s17 = sadd.s32 1, %s13
    $region7: #{tpu_custom_call.1} parent=1 // loop_footer_branch
      %12 = sbr.rel target = $region3
    $region8: #{tpu_custom_call.1} parent=1 // loop_exit
      _
    %446 = vsyncpa [#allocation5], 1
    %s447 = scalar_lea.sflag [#allocation5], 1
    %448 = vsyncpa %s447, 1
    %449 = vsyncpa [#allocation6], 1
    %s450 = scalar_lea.sflag [#allocation6], 1
    %451 = vsyncpa %s450, 1

</llo_original>
